<compile_context>
chip_gen: v5e
topology: v5e:2x2
jax: 0.10.0
libtpu: 0.0.40
codegen_flags: <defaults>
</compile_context>

<pallas_src>
import numpy as np
import jax
import jax.numpy as jnp
from jax.experimental import pallas as pl
from jax.experimental.pallas import tpu as pltpu


def _make_distill_kernel(ncrops: int):
    """Kernel closed over the static number of student crops."""

    def kernel(temps_ref, s_ref, t_ref, out_ref):
        # temps_ref: SMEM (2,)  f32  -> [1/student_temp, 1/teacher_temp]
        # s_ref:     VMEM (ncrops, TB, D) student logits (native dtype)
        # t_ref:     VMEM (2, TB, D)      teacher logits (native dtype)
        # out_ref:   VMEM (1, 1) f32      partial sum for this batch tile
        inv_st = temps_ref[0]
        inv_tt = temps_ref[1]

        # ---- teacher softmax: one fused pass over both global views ----
        t = t_ref[...].astype(jnp.float32) * inv_tt            # (2, TB, D)
        t = t - jnp.max(t, axis=-1, keepdims=True)
        e = jnp.exp(t)
        denom = jnp.sum(e, axis=-1, keepdims=True)              # (2, TB, 1)
        q = e * pl.reciprocal(denom, approx=True)               # (2, TB, D)

        q0 = q[0]
        q1 = q[1]
        q_sum = q0 + q1
        # Exact row sums of the (approximately normalised) teacher probs so
        # the lse * sum(q) rewrite below stays algebraically exact.
        qs0 = jnp.sum(q0, axis=-1, keepdims=True)               # (TB, 1) ~1
        qs1 = jnp.sum(q1, axis=-1, keepdims=True)
        qs_sum = qs0 + qs1

        total = jnp.zeros((1, 1), jnp.float32)
        # Static (unrolled) loop over student views; one (TB, D) CE pass each.
        for v in range(ncrops):
            s = s_ref[v].astype(jnp.float32) * inv_st           # (TB, D)
            sm = s - jnp.max(s, axis=-1, keepdims=True)
            lse = jnp.log(jnp.sum(jnp.exp(sm), axis=-1, keepdims=True))  # (TB,1)
            # Skip the matching teacher view (v == iq in the reference loop).
            if v == 0:
                q_eff, qs_eff = q1, qs1
            elif v == 1:
                q_eff, qs_eff = q0, qs0
            else:
                q_eff, qs_eff = q_sum, qs_sum
            cross = jnp.sum(q_eff * sm, axis=-1, keepdims=True)          # (TB,1)
            rows = lse * qs_eff - cross                                   # == sum(q*(-log p))
            total = total + jnp.sum(rows, axis=0, keepdims=True)          # (1,1)

        out_ref[...] = total

    return kernel


def _pick_batch_tile(batch, ncrops, d, itemsize):
    """Largest sublane-aligned divisor of `batch` within a modest VMEM budget."""
    budget = 8 * 1024 * 1024  # well under the default scoped VMEM on all gens
    # inputs double-buffered + ~6 f32 (TB, D) temporaries in flight
    per_row = 2 * (ncrops + 2) * d * itemsize + 24 * d
    cap = max(1, min(budget // per_row, 512, batch))
    aligned = [t for t in range(8, int(cap) + 1, 8) if batch % t == 0]
    if aligned:
        return max(aligned)
    # Full batch dim is always a legal block shape (no (8,128) constraint).
    return batch


def _distill_loss_pallas(student_output, teacher_output, student_temp,
                         teacher_temp, ncrops, tile_rows=None):
    total_rows, d = student_output.shape
    assert ncrops >= 2, "need at least the two global crops"
    assert total_rows % ncrops == 0
    batch = total_rows // ncrops
    assert teacher_output.shape == (2 * batch, d), "teacher must contain 2 views"

    if tile_rows is None:
        tile_rows = _pick_batch_tile(
            batch, ncrops, d, jnp.dtype(student_output.dtype).itemsize)
    assert batch % tile_rows == 0
    nbt = batch // tile_rows

    # Row-contiguous reshapes == torch .chunk(ncrops) / .chunk(2); no data copy.
    s3 = student_output.reshape(ncrops, batch, d)
    t3 = teacher_output.reshape(2, batch, d)
    inv_temps = jnp.array([1.0 / student_temp, 1.0 / teacher_temp],
                          dtype=jnp.float32)

    kernel = _make_distill_kernel(ncrops)
    partials = pl.pallas_call(
        kernel,
        out_shape=jax.ShapeDtypeStruct((nbt, 1, 1), jnp.float32),
        grid_spec=pltpu.PrefetchScalarGridSpec(
            num_scalar_prefetch=1,                # inv temperatures -> SMEM
            grid=(nbt,),                          # batch-tile axis only
            in_specs=[
                pl.BlockSpec((ncrops, tile_rows, d), lambda b, temps: (0, b, 0)),
                pl.BlockSpec((2, tile_rows, d), lambda b, temps: (0, b, 0)),
            ],
            out_specs=pl.BlockSpec((None, 1, 1), lambda b, temps: (b, 0, 0)),
        ),
        compiler_params=pltpu.CompilerParams(
            dimension_semantics=("parallel",)),   # shards batch tiles on v7x
    )(inv_temps, s3, t3)

    n_terms = 2 * (ncrops - 1)
    return jnp.sum(partials) / (n_terms * batch)


class DistillLoss:
    """JAX/Pallas port of the PyTorch DistillLoss module (forward only)."""

    def __init__(self, warmup_teacher_temp_epochs, nepochs, ncrops=2,
                 warmup_teacher_temp=0.07, teacher_temp=0.04, student_temp=0.1,
                 tile_rows=None):
        self.student_temp = student_temp
        self.ncrops = ncrops
        self.tile_rows = tile_rows
        self.teacher_temp_schedule = np.concatenate((
            np.linspace(warmup_teacher_temp, teacher_temp, warmup_teacher_temp_epochs),
            np.ones(nepochs - warmup_teacher_temp_epochs) * teacher_temp,
        ))

    def __call__(self, student_output, teacher_output, epoch):
        temp = float(self.teacher_temp_schedule[epoch])
        return _distill_loss_pallas(
            student_output, teacher_output,
            student_temp=float(self.student_temp),
            teacher_temp=temp,
            ncrops=self.ncrops,
            tile_rows=self.tile_rows,
        )


def _reference_loss(student_output, teacher_output, student_temp, teacher_temp, ncrops):
    """Pure-JAX reference mirroring the PyTorch forward exactly (f32)."""
    s = student_output.astype(jnp.float32) / student_temp
    B = s.shape[0] // ncrops
    student_chunks = [s[v * B:(v + 1) * B] for v in range(ncrops)]
    q_all = jax.nn.softmax(teacher_output.astype(jnp.float32) / teacher_temp, axis=-1)
    teacher_chunks = [q_all[i * B:(i + 1) * B] for i in range(2)]
    total, n = 0.0, 0
    for iq, q in enumerate(teacher_chunks):
        for v in range(ncrops):
            if v == iq:
                continue
            lp = jax.nn.log_softmax(student_chunks[v], axis=-1)
            total += jnp.mean(jnp.sum(-q * lp, axis=-1))
            n += 1
    return total / n


if __name__ == "__main__":
    # Small deterministic example: ncrops=4 (2 global + 2 local), B=32 per crop,
    # D=256 classes, bf16 inputs. tile_rows=16 -> 2 batch tiles -> grid=(2,).
    ncrops, B, D = 4, 32, 256
    epoch = 3

    key = jax.random.PRNGKey(0)
    k_s, k_t = jax.random.split(key)
    student_output = jax.random.normal(k_s, (ncrops * B, D), dtype=jnp.float32).astype(jnp.bfloat16)
    teacher_output = jax.random.normal(k_t, (2 * B, D), dtype=jnp.float32).astype(jnp.bfloat16)

    loss_fn = DistillLoss(
        warmup_teacher_temp_epochs=5, nepochs=20, ncrops=ncrops,
        warmup_teacher_temp=0.07, teacher_temp=0.04, student_temp=0.1,
        tile_rows=16,
    )

    loss = jax.block_until_ready(loss_fn(student_output, teacher_output, epoch))

    ref = _reference_loss(
        student_output, teacher_output,
        student_temp=0.1,
        teacher_temp=float(loss_fn.teacher_temp_schedule[epoch]),
        ncrops=ncrops,
    )
    # approx reciprocal (~2^-12 relative) is the only deliberate deviation.
    np.testing.assert_allclose(np.asarray(loss, dtype=np.float32),
                               np.asarray(ref, dtype=np.float32),
                               rtol=3e-3, atol=3e-2)

    print("KERNEL_OK")
</pallas_src>

<mosaic_0001>
module attributes {stable_mosaic.version = 11 : i64} {
  func.func @kernel(%arg0: i32, %arg1: memref<2xf32, #tpu.memory_space<smem>>, %arg2: memref<4x16x256xbf16, #tpu.memory_space<vmem>>, %arg3: memref<2x16x256xbf16, #tpu.memory_space<vmem>>, %arg4: memref<1x1x1xf32, #tpu.memory_space<vmem>>) attributes {dimension_semantics = [#tpu.dimension_semantics<parallel>], iteration_bounds = array<i64: 2>, scalar_prefetch = 1 : i64, scratch_operands = 0 : i64, tpu.core_type = #tpu.core_type<tc>, window_params = [{transform_indices = @transform_0, window_bounds = array<i64: 4, 16, 256>}, {transform_indices = @transform_1, window_bounds = array<i64: 2, 16, 256>}, {transform_indices = @transform_2, window_bounds = array<i64: 1, 1, 1>}]} {
    %c0 = arith.constant 0 : index
    %0 = memref.load %arg1[%c0] : memref<2xf32, #tpu.memory_space<smem>>
    %c1 = arith.constant 1 : index
    %1 = memref.load %arg1[%c1] : memref<2xf32, #tpu.memory_space<smem>>
    %c0_0 = arith.constant 0 : index
    %c0_1 = arith.constant 0 : index
    %c0_2 = arith.constant 0 : index
    %2 = vector.load %arg3[%c0_0, %c0_1, %c0_2] : memref<2x16x256xbf16, #tpu.memory_space<vmem>>, vector<2x16x256xbf16>
    %3 = arith.extf %2 : vector<2x16x256xbf16> to vector<2x16x256xf32>
    %4 = vector.broadcast %1 : f32 to vector<2x16x256xf32>
    %5 = arith.mulf %3, %4 : vector<2x16x256xf32>
    %cst = arith.constant dense<0xFF800000> : vector<2x16xf32>
    %6 = vector.multi_reduction <maximumf>, %5, %cst [2] : vector<2x16x256xf32> to vector<2x16xf32>
    %7 = vector.shape_cast %6 : vector<2x16xf32> to vector<2x16x1xf32>
    %8 = vector.broadcast %7 : vector<2x16x1xf32> to vector<2x16x256xf32>
    %9 = arith.subf %5, %8 : vector<2x16x256xf32>
    %10 = math.exp %9 : vector<2x16x256xf32>
    %cst_3 = arith.constant dense<0.000000e+00> : vector<2x16xf32>
    %11 = vector.multi_reduction <add>, %10, %cst_3 [2] : vector<2x16x256xf32> to vector<2x16xf32>
    %12 = vector.shape_cast %11 : vector<2x16xf32> to vector<2x16x1xf32>
    %13 = tpu.reciprocal %12 {approx = true} : vector<2x16x1xf32> -> vector<2x16x1xf32>
    %14 = vector.broadcast %13 : vector<2x16x1xf32> to vector<2x16x256xf32>
    %15 = arith.mulf %10, %14 : vector<2x16x256xf32>
    %16 = vector.extract_strided_slice %15 {offsets = [0, 0, 0], sizes = [1, 16, 256], strides = [1, 1, 1]} : vector<2x16x256xf32> to vector<1x16x256xf32>
    %17 = vector.shape_cast %16 : vector<1x16x256xf32> to vector<16x256xf32>
    %18 = vector.extract_strided_slice %15 {offsets = [1, 0, 0], sizes = [1, 16, 256], strides = [1, 1, 1]} : vector<2x16x256xf32> to vector<1x16x256xf32>
    %19 = vector.shape_cast %18 : vector<1x16x256xf32> to vector<16x256xf32>
    %20 = arith.addf %17, %19 : vector<16x256xf32>
    %cst_4 = arith.constant dense<0.000000e+00> : vector<16xf32>
    %21 = vector.multi_reduction <add>, %17, %cst_4 [1] : vector<16x256xf32> to vector<16xf32>
    %22 = vector.shape_cast %21 : vector<16xf32> to vector<16x1xf32>
    %cst_5 = arith.constant dense<0.000000e+00> : vector<16xf32>
    %23 = vector.multi_reduction <add>, %19, %cst_5 [1] : vector<16x256xf32> to vector<16xf32>
    %24 = vector.shape_cast %23 : vector<16xf32> to vector<16x1xf32>
    %25 = arith.addf %22, %24 : vector<16x1xf32>
    %cst_6 = arith.constant 0.000000e+00 : f32
    %26 = vector.broadcast %cst_6 : f32 to vector<1x1xf32>
    %c0_7 = arith.constant 0 : index
    %c0_8 = arith.constant 0 : index
    %c0_9 = arith.constant 0 : index
    %27 = vector.load %arg2[%c0_7, %c0_8, %c0_9] : memref<4x16x256xbf16, #tpu.memory_space<vmem>>, vector<1x16x256xbf16>
    %28 = vector.shape_cast %27 : vector<1x16x256xbf16> to vector<16x256xbf16>
    %29 = arith.extf %28 : vector<16x256xbf16> to vector<16x256xf32>
    %30 = vector.broadcast %0 : f32 to vector<16x256xf32>
    %31 = arith.mulf %29, %30 : vector<16x256xf32>
    %cst_10 = arith.constant dense<0xFF800000> : vector<16xf32>
    %32 = vector.multi_reduction <maximumf>, %31, %cst_10 [1] : vector<16x256xf32> to vector<16xf32>
    %33 = vector.shape_cast %32 : vector<16xf32> to vector<16x1xf32>
    %34 = vector.broadcast %33 : vector<16x1xf32> to vector<16x256xf32>
    %35 = arith.subf %31, %34 : vector<16x256xf32>
    %36 = math.exp %35 : vector<16x256xf32>
    %cst_11 = arith.constant dense<0.000000e+00> : vector<16xf32>
    %37 = vector.multi_reduction <add>, %36, %cst_11 [1] : vector<16x256xf32> to vector<16xf32>
    %38 = vector.shape_cast %37 : vector<16xf32> to vector<16x1xf32>
    %39 = math.log %38 : vector<16x1xf32>
    %40 = arith.mulf %19, %35 : vector<16x256xf32>
    %cst_12 = arith.constant dense<0.000000e+00> : vector<16xf32>
    %41 = vector.multi_reduction <add>, %40, %cst_12 [1] : vector<16x256xf32> to vector<16xf32>
    %42 = vector.shape_cast %41 : vector<16xf32> to vector<16x1xf32>
    %43 = arith.mulf %39, %24 : vector<16x1xf32>
    %44 = arith.subf %43, %42 : vector<16x1xf32>
    %cst_13 = arith.constant dense<0.000000e+00> : vector<1xf32>
    %45 = vector.multi_reduction <add>, %44, %cst_13 [0] : vector<16x1xf32> to vector<1xf32>
    %46 = vector.shape_cast %45 : vector<1xf32> to vector<1x1xf32>
    %47 = arith.addf %26, %46 : vector<1x1xf32>
    %c1_14 = arith.constant 1 : index
    %c0_15 = arith.constant 0 : index
    %c0_16 = arith.constant 0 : index
    %48 = vector.load %arg2[%c1_14, %c0_15, %c0_16] : memref<4x16x256xbf16, #tpu.memory_space<vmem>>, vector<1x16x256xbf16>
    %49 = vector.shape_cast %48 : vector<1x16x256xbf16> to vector<16x256xbf16>
    %50 = arith.extf %49 : vector<16x256xbf16> to vector<16x256xf32>
    %51 = vector.broadcast %0 : f32 to vector<16x256xf32>
    %52 = arith.mulf %50, %51 : vector<16x256xf32>
    %cst_17 = arith.constant dense<0xFF800000> : vector<16xf32>
    %53 = vector.multi_reduction <maximumf>, %52, %cst_17 [1] : vector<16x256xf32> to vector<16xf32>
    %54 = vector.shape_cast %53 : vector<16xf32> to vector<16x1xf32>
    %55 = vector.broadcast %54 : vector<16x1xf32> to vector<16x256xf32>
    %56 = arith.subf %52, %55 : vector<16x256xf32>
    %57 = math.exp %56 : vector<16x256xf32>
    %cst_18 = arith.constant dense<0.000000e+00> : vector<16xf32>
    %58 = vector.multi_reduction <add>, %57, %cst_18 [1] : vector<16x256xf32> to vector<16xf32>
    %59 = vector.shape_cast %58 : vector<16xf32> to vector<16x1xf32>
    %60 = math.log %59 : vector<16x1xf32>
    %61 = arith.mulf %17, %56 : vector<16x256xf32>
    %cst_19 = arith.constant dense<0.000000e+00> : vector<16xf32>
    %62 = vector.multi_reduction <add>, %61, %cst_19 [1] : vector<16x256xf32> to vector<16xf32>
    %63 = vector.shape_cast %62 : vector<16xf32> to vector<16x1xf32>
    %64 = arith.mulf %60, %22 : vector<16x1xf32>
    %65 = arith.subf %64, %63 : vector<16x1xf32>
    %cst_20 = arith.constant dense<0.000000e+00> : vector<1xf32>
    %66 = vector.multi_reduction <add>, %65, %cst_20 [0] : vector<16x1xf32> to vector<1xf32>
    %67 = vector.shape_cast %66 : vector<1xf32> to vector<1x1xf32>
    %68 = arith.addf %47, %67 : vector<1x1xf32>
    %c2 = arith.constant 2 : index
    %c0_21 = arith.constant 0 : index
    %c0_22 = arith.constant 0 : index
    %69 = vector.load %arg2[%c2, %c0_21, %c0_22] : memref<4x16x256xbf16, #tpu.memory_space<vmem>>, vector<1x16x256xbf16>
    %70 = vector.shape_cast %69 : vector<1x16x256xbf16> to vector<16x256xbf16>
    %71 = arith.extf %70 : vector<16x256xbf16> to vector<16x256xf32>
    %72 = vector.broadcast %0 : f32 to vector<16x256xf32>
    %73 = arith.mulf %71, %72 : vector<16x256xf32>
    %cst_23 = arith.constant dense<0xFF800000> : vector<16xf32>
    %74 = vector.multi_reduction <maximumf>, %73, %cst_23 [1] : vector<16x256xf32> to vector<16xf32>
    %75 = vector.shape_cast %74 : vector<16xf32> to vector<16x1xf32>
    %76 = vector.broadcast %75 : vector<16x1xf32> to vector<16x256xf32>
    %77 = arith.subf %73, %76 : vector<16x256xf32>
    %78 = math.exp %77 : vector<16x256xf32>
    %cst_24 = arith.constant dense<0.000000e+00> : vector<16xf32>
    %79 = vector.multi_reduction <add>, %78, %cst_24 [1] : vector<16x256xf32> to vector<16xf32>
    %80 = vector.shape_cast %79 : vector<16xf32> to vector<16x1xf32>
    %81 = math.log %80 : vector<16x1xf32>
    %82 = arith.mulf %20, %77 : vector<16x256xf32>
    %cst_25 = arith.constant dense<0.000000e+00> : vector<16xf32>
    %83 = vector.multi_reduction <add>, %82, %cst_25 [1] : vector<16x256xf32> to vector<16xf32>
    %84 = vector.shape_cast %83 : vector<16xf32> to vector<16x1xf32>
    %85 = arith.mulf %81, %25 : vector<16x1xf32>
    %86 = arith.subf %85, %84 : vector<16x1xf32>
    %cst_26 = arith.constant dense<0.000000e+00> : vector<1xf32>
    %87 = vector.multi_reduction <add>, %86, %cst_26 [0] : vector<16x1xf32> to vector<1xf32>
    %88 = vector.shape_cast %87 : vector<1xf32> to vector<1x1xf32>
    %89 = arith.addf %68, %88 : vector<1x1xf32>
    %c3 = arith.constant 3 : index
    %c0_27 = arith.constant 0 : index
    %c0_28 = arith.constant 0 : index
    %90 = vector.load %arg2[%c3, %c0_27, %c0_28] : memref<4x16x256xbf16, #tpu.memory_space<vmem>>, vector<1x16x256xbf16>
    %91 = vector.shape_cast %90 : vector<1x16x256xbf16> to vector<16x256xbf16>
    %92 = arith.extf %91 : vector<16x256xbf16> to vector<16x256xf32>
    %93 = vector.broadcast %0 : f32 to vector<16x256xf32>
    %94 = arith.mulf %92, %93 : vector<16x256xf32>
    %cst_29 = arith.constant dense<0xFF800000> : vector<16xf32>
    %95 = vector.multi_reduction <maximumf>, %94, %cst_29 [1] : vector<16x256xf32> to vector<16xf32>
    %96 = vector.shape_cast %95 : vector<16xf32> to vector<16x1xf32>
    %97 = vector.broadcast %96 : vector<16x1xf32> to vector<16x256xf32>
    %98 = arith.subf %94, %97 : vector<16x256xf32>
    %99 = math.exp %98 : vector<16x256xf32>
    %cst_30 = arith.constant dense<0.000000e+00> : vector<16xf32>
    %100 = vector.multi_reduction <add>, %99, %cst_30 [1] : vector<16x256xf32> to vector<16xf32>
    %101 = vector.shape_cast %100 : vector<16xf32> to vector<16x1xf32>
    %102 = math.log %101 : vector<16x1xf32>
    %103 = arith.mulf %20, %98 : vector<16x256xf32>
    %cst_31 = arith.constant dense<0.000000e+00> : vector<16xf32>
    %104 = vector.multi_reduction <add>, %103, %cst_31 [1] : vector<16x256xf32> to vector<16xf32>
    %105 = vector.shape_cast %104 : vector<16xf32> to vector<16x1xf32>
    %106 = arith.mulf %102, %25 : vector<16x1xf32>
    %107 = arith.subf %106, %105 : vector<16x1xf32>
    %cst_32 = arith.constant dense<0.000000e+00> : vector<1xf32>
    %108 = vector.multi_reduction <add>, %107, %cst_32 [0] : vector<16x1xf32> to vector<1xf32>
    %109 = vector.shape_cast %108 : vector<1xf32> to vector<1x1xf32>
    %110 = arith.addf %89, %109 : vector<1x1xf32>
    %c0_33 = arith.constant 0 : index
    %c0_34 = arith.constant 0 : index
    %c0_35 = arith.constant 0 : index
    %111 = vector.load %arg4[%c0_33, %c0_34, %c0_35] : memref<1x1x1xf32, #tpu.memory_space<vmem>>, vector<1x1x1xf32>
    %112 = vector.shape_cast %111 : vector<1x1x1xf32> to vector<1x1xf32>
    %113 = vector.shape_cast %110 : vector<1x1xf32> to vector<1x1x1xf32>
    tpu.vector_store %arg4[%c0_33, %c0_34, %c0_35], %113 {strides = array<i32>} : memref<1x1x1xf32, #tpu.memory_space<vmem>>, vector<1x1x1xf32>,
    return
  }
  func.func @transform_0(%arg0: i32, %arg1: memref<2xf32, #tpu.memory_space<smem>>) -> (i32, i32, i32) {
    %c0_i32 = arith.constant 0 : i32
    %c0_i32_0 = arith.constant 0 : i32
    %c0_i32_1 = arith.constant 0 : i32
    return %c0_i32, %arg0, %c0_i32_0 : i32, i32, i32
  }
  func.func @transform_1(%arg0: i32, %arg1: memref<2xf32, #tpu.memory_space<smem>>) -> (i32, i32, i32) {
    %c0_i32 = arith.constant 0 : i32
    %c0_i32_0 = arith.constant 0 : i32
    %c0_i32_1 = arith.constant 0 : i32
    return %c0_i32, %arg0, %c0_i32_0 : i32, i32, i32
  }
  func.func @transform_2(%arg0: i32, %arg1: memref<2xf32, #tpu.memory_space<smem>>) -> (i32, i32, i32) {
    %c0_i32 = arith.constant 0 : i32
    %c0_i32_0 = arith.constant 0 : i32
    %c0_i32_1 = arith.constant 0 : i32
    return %arg0, %c0_i32, %c0_i32_0 : i32, i32, i32
  }
}

</mosaic_0001>

<llo_original>
// kernel: tpu_custom_call.1
$region0: #{tpu_custom_call.1}
  #allocation0 [shape = 'u32[]', space=smem, size = 0x4, offset = 0x4, fixed_abs, tag = 'smem constant byte address 0x4 - core index']
  #allocation1 [shape = 'u32[72,128]{1,0:T(1,128)}', space=vmem, size = 0x9000, scoped, tag = 'internal scratch']
  #allocation2 [shape = 's32[1]{0}', space=sflag, size = 0x4, scoped, tag = 'scoped memory for tpu_custom_call.1']
  #allocation3 [shape = 'u8[512]{0}', space=smem, size = 0x200, scoped, tag = 'prefetched SMEM operand 0']
  #allocation8 [shape = 's32[]', space=sflag, size = 0x4, offset = 0, fixed_abs, tag = 'sflag constant byte address 0x0 - dummy sync flag']
  #allocation10 [shape = 's32[]', space=sflag, size = 0x4, offset = 0, fixed_abs, tag = 'sflag constant byte address 0x0 - dummy sync flag']
  %s0 = inlined_call_operand.hbm [shape: f32[2], index: 0, kind: input, shape index: {}]
  %s1 = inlined_call_operand.hbm [shape: bf16[4,32,256], index: 1, kind: input, shape index: {}]
  %s2 = inlined_call_operand.hbm [shape: bf16[2,32,256], index: 2, kind: input, shape index: {}]
  %s3 = inlined_call_operand.vmem [shape: f32[2,1,1], index: 3, kind: output, shape index: {}]
  %s4 = sld [smem:[#allocation0]]
  $region49: #{tpu_custom_call.1} parent=0
    _
  %s6 = ssub.s32 1, %s4
  %s7 = scalar_select 0, %s6, %s4
  %s9 = sshll.u32 %s0, 4
  %s10 = int_to_ptr.hbm [resolvable:$true] %s9
  %12 = dma.hbm_to_smem %s10, 16, [#allocation3], [#allocation2]
  %14 = dma.done [#allocation2], 16
  %15 = sfence
  $region1: #{tpu_custom_call.1} parent=0
    #allocation4 [shape = 'u8[65536]{0}', space=vmem, size = 0x10000, scoped, tag = 'input window, operand 1']
    #allocation5 [shape = 's32[2]{0}', space=sflag, size = 0x8, scoped, tag = 'scoped memory for tpu_custom_call.1']
    #allocation6 [shape = 'u8[32768]{0}', space=vmem, size = 0x8000, scoped, tag = 'input window, operand 2']
    #allocation7 [shape = 's32[2]{0}', space=sflag, size = 0x8, scoped, tag = 'scoped memory for tpu_custom_call.1']
    %16 = vsyncpa [#allocation5], 0
    %s17 = scalar_lea.sflag [#allocation5], 1
    %18 = vsyncpa %s17, 0
    %19 = vsyncpa [#allocation7], 0
    %s20 = scalar_lea.sflag [#allocation7], 1
    %21 = vsyncpa %s20, 0
    loop: start=0, step=1, limit=4
    $region2: #{tpu_custom_call.1} parent=1 // loop_pre_header
      _
    $region3: #{tpu_custom_call.1} parent=1 // loop_header
      %s23 = sphi 0, %s27
      %p24 = scmp.ge.s32.totalorder %s23, 4
      %s33 = sphi 0, %s35
      %s36 = sphi 0, %s33
      %s37 = sphi 0, %s36
      %s53 = sphi 0, %s37
      %s59 = sphi 0, %s61
      %s62 = sphi 0, %s59
      %s63 = sphi 0, %s62
      %s79 = sphi 0, %s63
      %s85 = sphi 0, %s87
      %s88 = sphi 0, %s85
      %s89 = sphi 0, %s88
      %s105 = sphi 0, %s89
    $region4: #{tpu_custom_call.1} parent=1 // loop_header_branch
      %26 = sbr.rel (%p24) target = $region8
    $region5: #{tpu_custom_call.1} parent=1 // loop_body
      %s28 = ssub.s32 %s23, 1
      %s29 = ssub.s32 %s23, 2
      %s30 = sadd.s32 %s23, 1
      %s31 = ssub.s32 %s23, %s30
      %p32 = scmp.eq.s32.totalorder %s31, 0
      %s34 = sadd.s32 %s33, 1
      %s35 = scalar_select %p32, %s33, %s34
      %p38 = pneg %p32
      %p39 = scmp.eq.s32.totalorder %s23, 1
      %p40 = por %p38, %p39
      %p41 = scmp.ne.s32.totalorder %s33, %s36
      %p42 = scmp.eq.s32.totalorder %s23, 0
      %p43 = por %p41, %p42
      %p44 = scmp.ne.s32.totalorder %s33, %s36
      %p45 = scmp.eq.s32.totalorder %s28, 1
      %p46 = por %p44, %p45
      %p47 = scmp.ne.s32.totalorder %s36, %s37
      %p48 = scmp.eq.s32.totalorder %s28, 0
      %p49 = por %p47, %p48
      %p50 = scmp.ne.s32.totalorder %s36, %s37
      %p51 = scmp.eq.s32.totalorder %s29, 1
      %p52 = por %p50, %p51
      %p54 = scmp.ne.s32.totalorder %s37, %s53
      %p55 = scmp.eq.s32.totalorder %s29, 0
      %p56 = por %p54, %p55
      %s57 = ssub.s32 %s23, %s30
      %p58 = scmp.eq.s32.totalorder %s57, 0
      %s60 = sadd.s32 %s59, 1
      %s61 = scalar_select %p58, %s59, %s60
      %p64 = pneg %p58
      %p65 = scmp.eq.s32.totalorder %s23, 1
      %p66 = por %p64, %p65
      %p67 = scmp.ne.s32.totalorder %s59, %s62
      %p68 = scmp.eq.s32.totalorder %s23, 0
      %p69 = por %p67, %p68
      %p70 = scmp.ne.s32.totalorder %s59, %s62
      %p71 = scmp.eq.s32.totalorder %s28, 1
      %p72 = por %p70, %p71
      %p73 = scmp.ne.s32.totalorder %s62, %s63
      %p74 = scmp.eq.s32.totalorder %s28, 0
      %p75 = por %p73, %p74
      %p76 = scmp.ne.s32.totalorder %s62, %s63
      %p77 = scmp.eq.s32.totalorder %s29, 1
      %p78 = por %p76, %p77
      %p80 = scmp.ne.s32.totalorder %s63, %s79
      %p81 = scmp.eq.s32.totalorder %s29, 0
      %p82 = por %p80, %p81
      %s83 = ssub.s32 %s23, %s30
      %p84 = scmp.eq.s32.totalorder %s83, 0
      %s86 = sadd.s32 %s85, 1
      %s87 = scalar_select %p84, %s85, %s86
      %p90 = pneg %p84
      %p91 = scmp.eq.s32.totalorder %s23, 1
      %p92 = por %p90, %p91
      %p93 = scmp.ne.s32.totalorder %s85, %s88
      %p94 = scmp.eq.s32.totalorder %s23, 0
      %p95 = por %p93, %p94
      %p96 = scmp.ne.s32.totalorder %s85, %s88
      %p97 = scmp.eq.s32.totalorder %s28, 1
      %p98 = por %p96, %p97
      %p99 = scmp.ne.s32.totalorder %s88, %s89
      %p100 = scmp.eq.s32.totalorder %s28, 0
      %p101 = por %p99, %p100
      %p102 = scmp.ne.s32.totalorder %s88, %s89
      %p103 = scmp.eq.s32.totalorder %s29, 1
      %p104 = por %p102, %p103
      %p106 = scmp.ne.s32.totalorder %s89, %s105
      %p107 = scmp.eq.s32.totalorder %s29, 0
      %p108 = por %p106, %p107
      %p109 = scmp.le.s32.totalorder 1, %s23
      %p110 = scmp.lt.s32.totalorder %s23, 3
      %p111 = pnand %p109, %p110
      %p112 = pneg %p111
      // Predicated region
      $region9: #{tpu_custom_call.1} parent=5 // pred_check
        _
      $region10: #{tpu_custom_call.1} parent=5 // pred_check_branch
        %114 = sbr.rel (%p111) target = $region12
      $region11: #{tpu_custom_call.1} parent=5 // pred_region
        %s115 = ssub.s32 %s23, 1
      $region12: #{tpu_custom_call.1} parent=5 // pred_fallthru
        _
      %p116 = scmp.lt.s32.totalorder %s23, 2
      // Predicated region
      $region13: #{tpu_custom_call.1} parent=5 // pred_check
        %p117 = pneg %p116
      $region14: #{tpu_custom_call.1} parent=5 // pred_check_branch
        %119 = sbr.rel (%p117) target = $region16
      $region15: #{tpu_custom_call.1} parent=5 // pred_region
        // Predicated region
        $region17: #{tpu_custom_call.1} parent=15 // pred_check
          %p120 = pneg %p43
        $region18: #{tpu_custom_call.1} parent=15 // pred_check_branch
          %122 = sbr.rel (%p120) target = $region20
        $region19: #{tpu_custom_call.1} parent=15 // pred_region
          #allocation9 [shape = 'u32[6]{0}', space=smem, size = 0x18, scoped, tag = 'DMA stride descriptor']
          %s123 = sand.u32 %s33, 1
          %s124 = scalar_lea.sflag [#allocation5], %s123
          %s125 = sand.u32 %s33, 1
          %s126 = smul.addr %s125, 64
          %s127 = scalar_lea.vmem [#allocation4], %s126
          %s128 = smul.u32 2, %s23
          %130 = vsyncadd %s124, 0
          %s131 = smul.addr %s128, 2
          %s132 = smul.addr %s131, 4
          %s133 = scalar_lea.hbm %s1, %s132
          %s135 = sshll.u32 1, 14
          %s136 = sxor.u32 4294967295, %s135
          %s138 = sld [smem:[#allocation0]]
          %s139 = sadd.s32 2, %s138
          %s141 = sshll.u32 7, 26
          %s142 = sxor.u32 4294967295, %s141
          %s143 = sand.u32 0, %s142
          %s144 = sshll.u32 %s139, 26
          %s145 = sor.u32 %s143, %s144
          %s146 = sshll.u32 %s133, 4
          %s147 = int_to_ptr.hbm [resolvable:$true] %s146
          %s148 = sshll.u32 %s127, 4
          %s149 = int_to_ptr.vmem [resolvable:$true] %s148
          %155 = sst [smem:[#allocation9]] 512
          %s156 = scalar_lea.smem [#allocation9], 1
          %157 = sst [smem:[%s156]] 256
          %s158 = scalar_lea.smem [#allocation9], 2
          %159 = sst [smem:[%s158]] 2
          %s160 = scalar_lea.smem [#allocation9], 3
          %161 = sst [smem:[%s160]] 128
          %s162 = scalar_lea.smem [#allocation9], 4
          %163 = sst [smem:[%s162]] 128
          %s164 = scalar_lea.smem [#allocation9], 5
          %165 = sst [smem:[%s164]] 8
          %167 = dma.general %s147, 1024, %s149, %s124, [#allocation8], [#allocation9], %s145, 0
        $region20: #{tpu_custom_call.1} parent=15 // pred_fallthru
          _
        // Predicated region
        $region21: #{tpu_custom_call.1} parent=15 // pred_check
          %p168 = pneg %p69
        $region22: #{tpu_custom_call.1} parent=15 // pred_check_branch
          %170 = sbr.rel (%p168) target = $region24
        $region23: #{tpu_custom_call.1} parent=15 // pred_region
          #allocation11 [shape = 'u32[6]{0}', space=smem, size = 0x18, scoped, tag = 'DMA stride descriptor']
          %s171 = sand.u32 %s59, 1
          %s172 = scalar_lea.sflag [#allocation7], %s171
          %s173 = sand.u32 %s59, 1
          %s174 = smul.addr %s173, 32
          %s175 = scalar_lea.vmem [#allocation6], %s174
          %s176 = smul.u32 2, %s23
          %178 = vsyncadd %s172, 0
          %s179 = smul.addr %s176, 2
          %s180 = smul.addr %s179, 4
          %s181 = scalar_lea.hbm %s2, %s180
          %s183 = sshll.u32 1, 14
          %s184 = sxor.u32 4294967295, %s183
          %s186 = sld [smem:[#allocation0]]
          %s187 = sadd.s32 2, %s186
          %s189 = sshll.u32 7, 26
          %s190 = sxor.u32 4294967295, %s189
          %s191 = sand.u32 0, %s190
          %s192 = sshll.u32 %s187, 26
          %s193 = sor.u32 %s191, %s192
          %s194 = sshll.u32 %s181, 4
          %s195 = int_to_ptr.hbm [resolvable:$true] %s194
          %s196 = sshll.u32 %s175, 4
          %s197 = int_to_ptr.vmem [resolvable:$true] %s196
          %203 = sst [smem:[#allocation11]] 512
          %s204 = scalar_lea.smem [#allocation11], 1
          %205 = sst [smem:[%s204]] 256
          %s206 = scalar_lea.smem [#allocation11], 2
          %207 = sst [smem:[%s206]] 2
          %s208 = scalar_lea.smem [#allocation11], 3
          %209 = sst [smem:[%s208]] 128
          %s210 = scalar_lea.smem [#allocation11], 4
          %211 = sst [smem:[%s210]] 128
          %s212 = scalar_lea.smem [#allocation11], 5
          %213 = sst [smem:[%s212]] 8
          %215 = dma.general %s195, 512, %s197, %s172, [#allocation10], [#allocation11], %s193, 0
        $region24: #{tpu_custom_call.1} parent=15 // pred_fallthru
          _
      $region16: #{tpu_custom_call.1} parent=5 // pred_fallthru
        _
      %p216 = scmp.le.s32.totalorder 1, %s23
      %p217 = scmp.lt.s32.totalorder %s23, 3
      %p218 = pnand %p216, %p217
      %p219 = pneg %p218
      // Predicated region
      $region25: #{tpu_custom_call.1} parent=5 // pred_check
        _
      $region26: #{tpu_custom_call.1} parent=5 // pred_check_branch
        %221 = sbr.rel (%p218) target = $region28
      $region27: #{tpu_custom_call.1} parent=5 // pred_region
        %s222 = ssub.s32 %s23, 1
        %s223 = sand.u32 %s36, 1
        %s224 = scalar_lea.sflag [#allocation5], %s223
        %s225 = sand.u32 %s36, 1
        %s226 = smul.addr %s225, 64
        %s227 = scalar_lea.vmem [#allocation4], %s226
        // Predicated region
        $region29: #{tpu_custom_call.1} parent=27 // pred_check
          %p228 = pneg %p49
        $region30: #{tpu_custom_call.1} parent=27 // pred_check_branch
          %230 = sbr.rel (%p228) target = $region32
        $region31: #{tpu_custom_call.1} parent=27 // pred_region
          %232 = dma.done %s224, 1024
        $region32: #{tpu_custom_call.1} parent=27 // pred_fallthru
          _
        %s233 = sand.u32 %s62, 1
        %s234 = scalar_lea.sflag [#allocation7], %s233
        %s235 = sand.u32 %s62, 1
        %s236 = smul.addr %s235, 32
        %s237 = scalar_lea.vmem [#allocation6], %s236
        // Predicated region
        $region33: #{tpu_custom_call.1} parent=27 // pred_check
          %p238 = pneg %p75
        $region34: #{tpu_custom_call.1} parent=27 // pred_check_branch
          %240 = sbr.rel (%p238) target = $region36
        $region35: #{tpu_custom_call.1} parent=27 // pred_region
          %242 = dma.done %s234, 512
        $region36: #{tpu_custom_call.1} parent=27 // pred_fallthru
          _
        %s243 = sand.u32 %s36, 1
        %s244 = scalar_lea.sflag [#allocation5], %s243
        %s245 = sand.u32 %s36, 1
        %s246 = smul.addr %s245, 64
        %s247 = scalar_lea.vmem [#allocation4], %s246
        %p248 = pneg %p49
        %p249 = pneg %p46
        %s250 = sand.u32 %s62, 1
        %s251 = scalar_lea.sflag [#allocation7], %s250
        %s252 = sand.u32 %s62, 1
        %s253 = smul.addr %s252, 32
        %s254 = scalar_lea.vmem [#allocation6], %s253
        %p255 = pneg %p75
        %p256 = pneg %p72
        %p257 = pneg %p101
        %p258 = pneg %p98
        %p259 = scmp.lt.s32.totalorder %s28, 1
        %s260 = scalar_select %p259, %s28, 1
        %s261 = scalar_lea.vmem %s3, %s260
        %s262 = smul.u32 2, %s28
        %s263 = smul.u32 2, %s28
        %p264 = scmp.lt.s32.totalorder %s28, 1
        %s265 = scalar_select %p264, %s28, 1
        %s266 = scalar_lea.vmem %s3, %s265
        %s267 = sld [smem:[#allocation3]]
        %s268 = sld [smem:[#allocation3 + $0x1]]
        %v269 = vld [vmem:[%s237] sm:$0xff]
        %v270 = vld [vmem:[%s237 + $0x8] sm:$0xff]
        %v271 = vld [vmem:[%s237 + $0x10] sm:$0xff]
        %v272 = vld [vmem:[%s237 + $0x18] sm:$0xff]
        %v273 = vunpack.c.l.bf16 %v269
        %v274 = vunpack.c.h.bf16 %v269
        %v275 = vunpack.c.l.bf16 %v270
        %v276 = vunpack.c.h.bf16 %v270
        %v277 = vunpack.c.l.bf16 %v271
        %v278 = vunpack.c.h.bf16 %v271
        %v279 = vunpack.c.l.bf16 %v272
        %v280 = vunpack.c.h.bf16 %v272
        %v281 = vstv %s268
        %v282 = vmul.f32 %v273, %v281
        %v283 = vmul.f32 %v274, %v281
        %v284 = vmul.f32 %v275, %v281
        %v285 = vmul.f32 %v276, %v281
        %v286 = vmul.f32 %v277, %v281
        %v287 = vmul.f32 %v278, %v281
        %v288 = vmul.f32 %v279, %v281
        %v289 = vmul.f32 %v280, %v281
        %v290 = vmax.f32 %v282, %v283
        %291 = vmax.xlane.f32.xlu0 %v290
        %v292 = vpop.xlane.xlu0 %291
        %v293 = vmax.f32 %v284, %v285
        %294 = vmax.xlane.f32.xlu0 %v293
        %v295 = vpop.xlane.xlu0 %294
        %v296 = vmax.f32 %v286, %v287
        %297 = vmax.xlane.f32.xlu0 %v296
        %v298 = vpop.xlane.xlu0 %297
        %v299 = vmax.f32 %v288, %v289
        %300 = vmax.xlane.f32.xlu0 %v299
        %v301 = vpop.xlane.xlu0 %300
        %v302 = vsub.f32 %v282, %v292
        %v303 = vsub.f32 %v283, %v292
        %v304 = vsub.f32 %v284, %v295
        %v305 = vsub.f32 %v285, %v295
        %v306 = vsub.f32 %v286, %v298
        %v307 = vsub.f32 %v287, %v298
        %v308 = vsub.f32 %v288, %v301
        %v309 = vsub.f32 %v289, %v301
        %v310 = vmul.f32 %v302, 1.442695
        %v311 = vpow.pop %v310
        %v312 = vmul.f32 %v303, 1.442695
        %v313 = vpow.pop %v312
        %v314 = vmul.f32 %v304, 1.442695
        %v315 = vpow.pop %v314
        %v316 = vmul.f32 %v305, 1.442695
        %v317 = vpow.pop %v316
        %v318 = vmul.f32 %v306, 1.442695
        %v319 = vpow.pop %v318
        %v320 = vmul.f32 %v307, 1.442695
        %v321 = vpow.pop %v320
        %v322 = vmul.f32 %v308, 1.442695
        %v323 = vpow.pop %v322
        %v324 = vmul.f32 %v309, 1.442695
        %v325 = vpow.pop %v324
        %v326 = vadd.f32 %v311, %v313
        %327 = vadd.xlane.f32.xlu0 %v326
        %v328 = vpop.xlane.xlu0 %327
        %v329 = vadd.f32 %v315, %v317
        %330 = vadd.xlane.f32.xlu0 %v329
        %v331 = vpop.xlane.xlu0 %330
        %v332 = vadd.f32 %v319, %v321
        %333 = vadd.xlane.f32.xlu0 %v332
        %v334 = vpop.xlane.xlu0 %333
        %v335 = vadd.f32 %v323, %v325
        %336 = vadd.xlane.f32.xlu0 %v335
        %v337 = vpop.xlane.xlu0 %336
        %v338 = vrcp.pop %v328
        %v339 = vrcp.pop %v331
        %v340 = vrcp.pop %v334
        %v341 = vrcp.pop %v337
        %v342 = vmul.f32 %v311, %v338
        %v343 = vmul.f32 %v313, %v338
        %v344 = vmul.f32 %v315, %v339
        %v345 = vmul.f32 %v317, %v339
        %v346 = vmul.f32 %v319, %v340
        %v347 = vmul.f32 %v321, %v340
        %v348 = vmul.f32 %v323, %v341
        %v349 = vmul.f32 %v325, %v341
        %v350 = vadd.f32 %v342, %v346
        %v351 = vadd.f32 %v343, %v347
        %v352 = vadd.f32 %v344, %v348
        %v353 = vadd.f32 %v345, %v349
        %v354 = vadd.f32 %v342, %v343
        %355 = vadd.xlane.f32.xlu0 %v354
        %v356 = vpop.xlane.xlu0 %355
        %v357 = vadd.f32 %v344, %v345
        %358 = vadd.xlane.f32.xlu0 %v357
        %v359 = vpop.xlane.xlu0 %358
        %v360 = vadd.f32 %v346, %v347
        %361 = vadd.xlane.f32.xlu0 %v360
        %v362 = vpop.xlane.xlu0 %361
        %v363 = vadd.f32 %v348, %v349
        %364 = vadd.xlane.f32.xlu0 %v363
        %v365 = vpop.xlane.xlu0 %364
        %v366 = vadd.f32 %v356, %v362
        %v367 = vadd.f32 %v359, %v365
        %v368 = vld [vmem:[%s227] sm:$0xff]
        %v369 = vld [vmem:[%s227 + $0x8] sm:$0xff]
        %v370 = vunpack.c.l.bf16 %v368
        %v371 = vunpack.c.h.bf16 %v368
        %v372 = vunpack.c.l.bf16 %v369
        %v373 = vunpack.c.h.bf16 %v369
        %v374 = vstv %s267
        %v375 = vmul.f32 %v370, %v374
        %v376 = vmul.f32 %v371, %v374
        %v377 = vmul.f32 %v372, %v374
        %v378 = vmul.f32 %v373, %v374
        %v379 = vmax.f32 %v375, %v376
        %380 = vmax.xlane.f32.xlu0 %v379
        %v381 = vpop.xlane.xlu0 %380
        %v382 = vmax.f32 %v377, %v378
        %383 = vmax.xlane.f32.xlu0 %v382
        %v384 = vpop.xlane.xlu0 %383
        %v385 = vsub.f32 %v375, %v381
        %v386 = vsub.f32 %v376, %v381
        %v387 = vsub.f32 %v377, %v384
        %v388 = vsub.f32 %v378, %v384
        %v389 = vmul.f32 %v385, 1.442695
        %v390 = vpow.pop %v389
        %v391 = vmul.f32 %v386, 1.442695
        %v392 = vpow.pop %v391
        %v393 = vmul.f32 %v387, 1.442695
        %v394 = vpow.pop %v393
        %v395 = vmul.f32 %v388, 1.442695
        %v396 = vpow.pop %v395
        %v397 = vadd.f32 %v390, %v392
        %398 = vadd.xlane.f32.xlu0 %v397
        %v399 = vpop.xlane.xlu0 %398
        %v400 = vadd.f32 %v394, %v396
        %401 = vadd.xlane.f32.xlu0 %v400
        %v402 = vpop.xlane.xlu0 %401
        %v403 = vlog2.pop %v399
        %v404 = vmul.f32 %v403, 0.6931472
        %v405 = vlog2.pop %v402
        %v406 = vmul.f32 %v405, 0.6931472
        %v407 = vmul.f32 %v346, %v385
        %v408 = vmul.f32 %v347, %v386
        %v409 = vmul.f32 %v348, %v387
        %v410 = vmul.f32 %v349, %v388
        %v411 = vadd.f32 %v407, %v408
        %412 = vadd.xlane.f32.xlu0 %v411
        %v413 = vpop.xlane.xlu0 %412
        %v414 = vadd.f32 %v409, %v410
        %415 = vadd.xlane.f32.xlu0 %v414
        %v416 = vpop.xlane.xlu0 %415
        %v417 = vmul.f32 %v404, %v362
        %v418 = vmul.f32 %v406, %v365
        %v419 = vsub.f32 %v417, %v413
        %v420 = vsub.f32 %v418, %v416
        %v421 = vadd.f32 %v419, %v420
        %v422 = vrot.slane %v421, 4
        %v423 = vadd.f32 %v421, %v422
        %v424 = vrot.slane %v423, 2
        %v425 = vadd.f32 %v423, %v424
        %v426 = vrot.slane %v425, 1
        %v427 = vadd.f32 %v425, %v426
        %v428 = vadd.f32 %v427, 0.0
        %s429 = scalar_lea.vmem %s227, 16 [#allocation4]
        %v430 = vld [vmem:[%s429] sm:$0xff]
        %v431 = vld [vmem:[%s429 + $0x8] sm:$0xff]
        %v432 = vunpack.c.l.bf16 %v430
        %v433 = vunpack.c.h.bf16 %v430
        %v434 = vunpack.c.l.bf16 %v431
        %v435 = vunpack.c.h.bf16 %v431
        %v436 = vmul.f32 %v432, %v374
        %v437 = vmul.f32 %v433, %v374
        %v438 = vmul.f32 %v434, %v374
        %v439 = vmul.f32 %v435, %v374
        %v440 = vmax.f32 %v436, %v437
        %441 = vmax.xlane.f32.xlu0 %v440
        %v442 = vpop.xlane.xlu0 %441
        %v443 = vmax.f32 %v438, %v439
        %444 = vmax.xlane.f32.xlu0 %v443
        %v445 = vpop.xlane.xlu0 %444
        %v446 = vsub.f32 %v436, %v442
        %v447 = vsub.f32 %v437, %v442
        %v448 = vsub.f32 %v438, %v445
        %v449 = vsub.f32 %v439, %v445
        %v450 = vmul.f32 %v446, 1.442695
        %v451 = vpow.pop %v450
        %v452 = vmul.f32 %v447, 1.442695
        %v453 = vpow.pop %v452
        %v454 = vmul.f32 %v448, 1.442695
        %v455 = vpow.pop %v454
        %v456 = vmul.f32 %v449, 1.442695
        %v457 = vpow.pop %v456
        %v458 = vadd.f32 %v451, %v453
        %459 = vadd.xlane.f32.xlu0 %v458
        %v460 = vpop.xlane.xlu0 %459
        %v461 = vadd.f32 %v455, %v457
        %462 = vadd.xlane.f32.xlu0 %v461
        %v463 = vpop.xlane.xlu0 %462
        %v464 = vlog2.pop %v460
        %v465 = vmul.f32 %v464, 0.6931472
        %v466 = vlog2.pop %v463
        %v467 = vmul.f32 %v466, 0.6931472
        %v468 = vmul.f32 %v342, %v446
        %v469 = vmul.f32 %v343, %v447
        %v470 = vmul.f32 %v344, %v448
        %v471 = vmul.f32 %v345, %v449
        %v472 = vadd.f32 %v468, %v469
        %473 = vadd.xlane.f32.xlu0 %v472
        %v474 = vpop.xlane.xlu0 %473
        %v475 = vadd.f32 %v470, %v471
        %476 = vadd.xlane.f32.xlu0 %v475
        %v477 = vpop.xlane.xlu0 %476
        %v478 = vmul.f32 %v465, %v356
        %v479 = vmul.f32 %v467, %v359
        %v480 = vsub.f32 %v478, %v474
        %v481 = vsub.f32 %v479, %v477
        %v482 = vadd.f32 %v480, %v481
        %v483 = vrot.slane %v482, 4
        %v484 = vadd.f32 %v482, %v483
        %v485 = vrot.slane %v484, 2
        %v486 = vadd.f32 %v484, %v485
        %v487 = vrot.slane %v486, 1
        %v488 = vadd.f32 %v486, %v487
        %v489 = vadd.f32 %v428, %v488
        %s490 = scalar_lea.vmem %s227, 32 [#allocation4]
        %v491 = vld [vmem:[%s490] sm:$0xff]
        %v492 = vld [vmem:[%s490 + $0x8] sm:$0xff]
        %v493 = vunpack.c.l.bf16 %v491
        %v494 = vunpack.c.h.bf16 %v491
        %v495 = vunpack.c.l.bf16 %v492
        %v496 = vunpack.c.h.bf16 %v492
        %v497 = vmul.f32 %v493, %v374
        %v498 = vmul.f32 %v494, %v374
        %v499 = vmul.f32 %v495, %v374
        %v500 = vmul.f32 %v496, %v374
        %v501 = vmax.f32 %v497, %v498
        %502 = vmax.xlane.f32.xlu0 %v501
        %v503 = vpop.xlane.xlu0 %502
        %v504 = vmax.f32 %v499, %v500
        %505 = vmax.xlane.f32.xlu0 %v504
        %v506 = vpop.xlane.xlu0 %505
        %v507 = vsub.f32 %v497, %v503
        %v508 = vsub.f32 %v498, %v503
        %v509 = vsub.f32 %v499, %v506
        %v510 = vsub.f32 %v500, %v506
        %v511 = vmul.f32 %v507, 1.442695
        %v512 = vpow.pop %v511
        %v513 = vmul.f32 %v508, 1.442695
        %v514 = vpow.pop %v513
        %v515 = vmul.f32 %v509, 1.442695
        %v516 = vpow.pop %v515
        %v517 = vmul.f32 %v510, 1.442695
        %v518 = vpow.pop %v517
        %v519 = vadd.f32 %v512, %v514
        %520 = vadd.xlane.f32.xlu0 %v519
        %v521 = vpop.xlane.xlu0 %520
        %v522 = vadd.f32 %v516, %v518
        %523 = vadd.xlane.f32.xlu0 %v522
        %v524 = vpop.xlane.xlu0 %523
        %v525 = vlog2.pop %v521
        %v526 = vmul.f32 %v525, 0.6931472
        %v527 = vlog2.pop %v524
        %v528 = vmul.f32 %v527, 0.6931472
        %v529 = vmul.f32 %v350, %v507
        %v530 = vmul.f32 %v351, %v508
        %v531 = vmul.f32 %v352, %v509
        %v532 = vmul.f32 %v353, %v510
        %v533 = vadd.f32 %v529, %v530
        %534 = vadd.xlane.f32.xlu0 %v533
        %v535 = vpop.xlane.xlu0 %534
        %v536 = vadd.f32 %v531, %v532
        %537 = vadd.xlane.f32.xlu0 %v536
        %v538 = vpop.xlane.xlu0 %537
        %v539 = vmul.f32 %v526, %v366
        %v540 = vmul.f32 %v528, %v367
        %v541 = vsub.f32 %v539, %v535
        %v542 = vsub.f32 %v540, %v538
        %v543 = vadd.f32 %v541, %v542
        %v544 = vrot.slane %v543, 4
        %v545 = vadd.f32 %v543, %v544
        %v546 = vrot.slane %v545, 2
        %v547 = vadd.f32 %v545, %v546
        %v548 = vrot.slane %v547, 1
        %v549 = vadd.f32 %v547, %v548
        %v550 = vadd.f32 %v489, %v549
        %s551 = scalar_lea.vmem %s227, 48 [#allocation4]
        %v552 = vld [vmem:[%s551] sm:$0xff]
        %v553 = vld [vmem:[%s551 + $0x8] sm:$0xff]
        %v554 = vunpack.c.l.bf16 %v552
        %v555 = vunpack.c.h.bf16 %v552
        %v556 = vunpack.c.l.bf16 %v553
        %v557 = vunpack.c.h.bf16 %v553
        %v558 = vmul.f32 %v554, %v374
        %v559 = vmul.f32 %v555, %v374
        %v560 = vmul.f32 %v556, %v374
        %v561 = vmul.f32 %v557, %v374
        %v562 = vmax.f32 %v558, %v559
        %563 = vmax.xlane.f32.xlu0 %v562
        %v564 = vpop.xlane.xlu0 %563
        %v565 = vmax.f32 %v560, %v561
        %566 = vmax.xlane.f32.xlu0 %v565
        %v567 = vpop.xlane.xlu0 %566
        %v568 = vsub.f32 %v558, %v564
        %v569 = vsub.f32 %v559, %v564
        %v570 = vsub.f32 %v560, %v567
        %v571 = vsub.f32 %v561, %v567
        %v572 = vmul.f32 %v568, 1.442695
        %v573 = vpow.pop %v572
        %v574 = vmul.f32 %v569, 1.442695
        %v575 = vpow.pop %v574
        %v576 = vmul.f32 %v570, 1.442695
        %v577 = vpow.pop %v576
        %v578 = vmul.f32 %v571, 1.442695
        %v579 = vpow.pop %v578
        %v580 = vadd.f32 %v573, %v575
        %581 = vadd.xlane.f32.xlu0 %v580
        %v582 = vpop.xlane.xlu0 %581
        %v583 = vadd.f32 %v577, %v579
        %584 = vadd.xlane.f32.xlu0 %v583
        %v585 = vpop.xlane.xlu0 %584
        %v586 = vlog2.pop %v582
        %v587 = vmul.f32 %v586, 0.6931472
        %v588 = vlog2.pop %v585
        %v589 = vmul.f32 %v588, 0.6931472
        %v590 = vmul.f32 %v350, %v568
        %v591 = vmul.f32 %v351, %v569
        %v592 = vmul.f32 %v352, %v570
        %v593 = vmul.f32 %v353, %v571
        %v594 = vadd.f32 %v590, %v591
        %595 = vadd.xlane.f32.xlu0 %v594
        %v596 = vpop.xlane.xlu0 %595
        %v597 = vadd.f32 %v592, %v593
        %598 = vadd.xlane.f32.xlu0 %v597
        %v599 = vpop.xlane.xlu0 %598
        %v600 = vmul.f32 %v587, %v366
        %v601 = vmul.f32 %v589, %v367
        %v602 = vsub.f32 %v600, %v596
        %v603 = vsub.f32 %v601, %v599
        %v604 = vadd.f32 %v602, %v603
        %v605 = vrot.slane %v604, 4
        %v606 = vadd.f32 %v604, %v605
        %v607 = vrot.slane %v606, 2
        %v608 = vadd.f32 %v606, %v607
        %v609 = vrot.slane %v608, 1
        %v610 = vadd.f32 %v608, %v609
        %v611 = vadd.f32 %v550, %v610
        %vm612 = vcmask 0
        %613 = vst.msk [vmem:[%s266] sm:$0x1] %vm612, %v611
        %p614 = scmp.lt.s32.totalorder %s28, 1
        %s615 = scalar_select %p614, %s28, 1
        %s616 = scalar_lea.vmem %s3, %s615
        // Predicated region
        $region37: #{tpu_custom_call.1} parent=27 // pred_check
          %p617 = pneg %p98
        $region38: #{tpu_custom_call.1} parent=27 // pred_check_branch
          %619 = sbr.rel (%p617) target = $region40
        $region39: #{tpu_custom_call.1} parent=27 // pred_region
          _
        $region40: #{tpu_custom_call.1} parent=27 // pred_fallthru
          _
      $region28: #{tpu_custom_call.1} parent=5 // pred_fallthru
        _
      %p620 = scmp.le.s32.totalorder 2, %s23
      // Predicated region
      $region41: #{tpu_custom_call.1} parent=5 // pred_check
        %p621 = pneg %p620
      $region42: #{tpu_custom_call.1} parent=5 // pred_check_branch
        %623 = sbr.rel (%p621) target = $region44
      $region43: #{tpu_custom_call.1} parent=5 // pred_region
        %s624 = ssub.s32 %s23, 2
        // Predicated region
        $region45: #{tpu_custom_call.1} parent=43 // pred_check
          %p625 = pneg %p104
        $region46: #{tpu_custom_call.1} parent=43 // pred_check_branch
          %627 = sbr.rel (%p625) target = $region48
        $region47: #{tpu_custom_call.1} parent=43 // pred_region
          %p628 = scmp.lt.s32.totalorder %s29, 1
          %s629 = scalar_select %p628, %s29, 1
          %s630 = scalar_lea.vmem %s3, %s629
        $region48: #{tpu_custom_call.1} parent=43 // pred_fallthru
          _
      $region44: #{tpu_custom_call.1} parent=5 // pred_fallthru
        _
    $region6: #{tpu_custom_call.1} parent=1 // loop_footer
      %s27 = sadd.s32 1, %s23
    $region7: #{tpu_custom_call.1} parent=1 // loop_footer_branch
      %22 = sbr.rel target = $region3
    $region8: #{tpu_custom_call.1} parent=1 // loop_exit
      _
    %631 = vsyncpa [#allocation5], 1
    %s632 = scalar_lea.sflag [#allocation5], 1
    %633 = vsyncpa %s632, 1
    %634 = vsyncpa [#allocation7], 1
    %s635 = scalar_lea.sflag [#allocation7], 1
    %636 = vsyncpa %s635, 1

</llo_original>
